<compile_context>
chip_gen: v7x
topology: tpu7x:2x2x1
jax: 0.10.0
libtpu: 0.0.40
codegen_flags: <defaults>
</compile_context>

<pallas_src>
import jax
import jax.numpy as jnp
from jax import lax
from jax.experimental import pallas as pl
from jax.experimental.pallas import tpu as pltpu


def _row_normalize(a):
    """Row-wise L2 normalization (same formula used by kernel path & reference)."""
    return a * lax.rsqrt(jnp.sum(a * a, axis=-1, keepdims=True) + 1e-12)


# ----------------------------- Pallas kernel ------------------------------ #
def eval_kernel(patches_ref, wc_ref, bc_ref, wf_ref, bf_ref, train_ref, out_ref):
    # One grid step == one sample, spatial axis lane-dense.
    #   patches : [K, P]      bf16  (K = Cin*9, P = H*W)
    #   wc      : [Cout, K]   bf16  flattened conv weight
    #   bc      : [Cout, 1]   f32
    #   wf      : [D, Cout]   bf16  transposed linear-head weight
    #   bf      : [D, 1]      f32
    #   train   : [N, D]      bf16  pre-normalized training features (hoisted)
    #   out     : [1, 1, 128] i32   argmax index broadcast over a full lane tile

    # Conv2d(3x3, pad=1) as one lane-dense bf16 MXU matmul, f32 accumulation.
    h = jnp.dot(wc_ref[...], patches_ref[...],
                preferred_element_type=jnp.float32)                # [Cout, P]
    h = jnp.maximum(h + bc_ref[...], 0.0)                          # bias + ReLU (f32)

    # Global average pool over the spatial (lane) axis -> [Cout, 1].
    pooled = jnp.mean(h, axis=1, keepdims=True)

    # Linear head: [D, Cout] @ [Cout, 1] -> [D, 1], f32 accumulation.
    feat = jnp.dot(wf_ref[...], pooled.astype(jnp.bfloat16),
                   preferred_element_type=jnp.float32) + bf_ref[...]

    # Cosine similarity: training side pre-normalized in the wrapper; only the
    # query feature is normalized here (EUP rsqrt, effectively free).
    inv = lax.rsqrt(jnp.sum(feat * feat, axis=0, keepdims=True) + 1e-12)   # [1,1]
    fn = (feat * inv).astype(jnp.bfloat16)                                  # [D,1]
    sim = jnp.dot(train_ref[...], fn,
                  preferred_element_type=jnp.float32)                       # [N,1]

    # First-occurrence argmax over the N training samples (like torch.argmax).
    # Assumes finite similarities (NaN inputs would map to index N).
    n = sim.shape[0]
    maxv = jnp.max(sim, axis=0, keepdims=True)                              # [1,1]
    idxs = lax.broadcasted_iota(jnp.int32, sim.shape, 0)                    # [N,1]
    cand = jnp.where(sim >= maxv, idxs, jnp.int32(n))
    best = jnp.min(cand, axis=0, keepdims=True)                             # [1,1]

    # Lane-dense, full-width (unmasked) store.
    out_ref[...] = jnp.broadcast_to(best[None], (1, 1, 128))


# ------------------------------- JAX glue ---------------------------------- #
def im2col_3x3_pad1_T(x):
    """x: [B, C, H, W] -> patches_T [C*9, B*H*W].

    Row index k = cin*9 + kh*3 + kw (matches wc.reshape(Cout, Cin*9));
    column index m = b*H*W + h*W + w (spatial positions lane-dense).
    """
    B, C, H, W = x.shape
    xp = jnp.pad(x, ((0, 0), (0, 0), (1, 1), (1, 1)))
    cols = [xp[:, :, di:di + H, dj:dj + W] for di in range(3) for dj in range(3)]
    pat = jnp.stack(cols, axis=2)              # [B, C, 9, H, W]
    pat = pat.transpose(1, 2, 0, 3, 4)         # [C, 9, B, H, W]
    return pat.reshape(C * 9, B * H * W)


def classification_eval_forward(x, params, training_features):
    """Pallas forward. x: [B, Cin, H, W] float32 -> [B] int32 class indices."""
    wc, bc, wf, bf = params
    B, Cin, H, W = x.shape
    Cout = wc.shape[0]
    D = wf.shape[1]
    N = training_features.shape[0]
    P = H * W
    K = Cin * 9
    assert P % 128 == 0, "spatial positions per sample must fill whole lane tiles"

    bf16, f32 = jnp.bfloat16, jnp.float32

    # Lane-dense bf16 operands for the MXU; biases stay f32.
    patches_T = im2col_3x3_pad1_T(x.astype(f32)).astype(bf16)        # [K, B*P]
    wc2 = wc.reshape(Cout, K).astype(bf16)                           # [Cout, K]
    bc2 = bc.reshape(Cout, 1).astype(f32)                            # [Cout, 1]
    wfT = wf.T.astype(bf16)                                          # [D, Cout]
    bf2 = bf.reshape(D, 1).astype(f32)                               # [D, 1]
    # Hoisted: normalize the (fixed) training features once, pre-oriented [N, D].
    train_n = _row_normalize(training_features.astype(f32)).astype(bf16)

    grid_spec = pltpu.PrefetchScalarGridSpec(
        num_scalar_prefetch=0,
        grid=(B,),                                                   # one sample / step
        in_specs=[
            pl.BlockSpec((K, P), lambda b: (0, b)),                  # patches (pipelined)
            pl.BlockSpec((Cout, K), lambda b: (0, 0)),               # conv weight
            pl.BlockSpec((Cout, 1), lambda b: (0, 0)),               # conv bias
            pl.BlockSpec((D, Cout), lambda b: (0, 0)),               # fc weight (T)
            pl.BlockSpec((D, 1), lambda b: (0, 0)),                  # fc bias
            pl.BlockSpec((N, D), lambda b: (0, 0)),                  # normalized train
        ],
        out_specs=pl.BlockSpec((1, 1, 128), lambda b: (b, 0, 0)),    # lane-dense tile
    )

    out3 = pl.pallas_call(
        eval_kernel,
        out_shape=jax.ShapeDtypeStruct((B, 1, 128), jnp.int32),
        grid_spec=grid_spec,
        compiler_params=pltpu.CompilerParams(
            dimension_semantics=("parallel",),        # shards batch on v7x megacore
            vmem_limit_bytes=32 * 1024 * 1024,        # sized for v7x's smaller VMEM
        ),
    )(patches_T, wc2, bc2, wfT, bf2, train_n)

    return out3[:, 0, 0]                                             # [B] int32


# ----------------------------- pure-JAX reference --------------------------- #
def reference_forward(x, params, training_features):
    """Same math as the module's forward, mirroring the kernel's precision
    (bf16 matmul operands, f32 accumulation) so indices match bit-for-bit."""
    wc, bc, wf, bf = params
    bf16, f32 = jnp.bfloat16, jnp.float32

    h = lax.conv_general_dilated(
        x.astype(bf16), wc.astype(bf16), (1, 1), ((1, 1), (1, 1)),
        dimension_numbers=("NCHW", "OIHW", "NCHW"),
        preferred_element_type=f32)
    h = jnp.maximum(h + bc[None, :, None, None], 0.0)
    pooled = jnp.mean(h, axis=(2, 3))                                # [B, Cout] f32
    feat = jnp.dot(pooled.astype(bf16), wf.astype(bf16),
                   preferred_element_type=f32) + bf                  # [B, D] f32
    fn = feat * lax.rsqrt(jnp.sum(feat * feat, -1, keepdims=True) + 1e-12)
    tn = _row_normalize(training_features.astype(f32))
    sim = jnp.dot(fn.astype(bf16), tn.astype(bf16).T,
                  preferred_element_type=f32)                        # [B, N]
    return jnp.argmax(sim, axis=1).astype(jnp.int32)


# --------------------------------- main ------------------------------------ #
if __name__ == "__main__":
    B, Cin, H, W = 2, 4, 16, 16
    Cout, D, N_TRAIN = 8, 32, 10

    key = jax.random.PRNGKey(0)
    kx, kwc, kbc, kwf, kbf, ktr = jax.random.split(key, 6)

    x = jax.random.normal(kx, (B, Cin, H, W), jnp.float32)
    wc = jax.random.normal(kwc, (Cout, Cin, 3, 3), jnp.float32) * 0.1
    bc = jax.random.normal(kbc, (Cout,), jnp.float32) * 0.1
    wf = jax.random.normal(kwf, (Cout, D), jnp.float32) * 0.1
    bf = jax.random.normal(kbf, (D,), jnp.float32) * 0.1
    training_features = jax.random.normal(ktr, (N_TRAIN, D), jnp.float32)

    params = (wc, bc, wf, bf)

    y = jax.jit(classification_eval_forward)(x, params, training_features)
    y = jax.block_until_ready(y)

    y_ref = reference_forward(x, params, training_features)
    assert y.shape == (B,)
    assert jnp.array_equal(y, y_ref), (y, y_ref)

    print("KERNEL_OK")
</pallas_src>

<mosaic_0001>
module attributes {stable_mosaic.version = 11 : i64} {
  func.func @eval_kernel(%arg0: i32, %arg1: memref<36x256xbf16, #tpu.memory_space<vmem>>, %arg2: memref<8x36xbf16, #tpu.memory_space<vmem>>, %arg3: memref<8x1xf32, #tpu.memory_space<vmem>>, %arg4: memref<32x8xbf16, #tpu.memory_space<vmem>>, %arg5: memref<32x1xf32, #tpu.memory_space<vmem>>, %arg6: memref<10x32xbf16, #tpu.memory_space<vmem>>, %arg7: memref<1x1x128xi32, #tpu.memory_space<vmem>>) attributes {dimension_semantics = [#tpu.dimension_semantics<parallel>], iteration_bounds = array<i64: 2>, scalar_prefetch = 0 : i64, scratch_operands = 0 : i64, tpu.core_type = #tpu.core_type<tc>, window_params = [{transform_indices = @transform_0, window_bounds = array<i64: 36, 256>}, {pipeline_mode = #tpu.pipeline_mode<synchronous>, transform_indices = @transform_1, window_bounds = array<i64: 8, 36>}, {pipeline_mode = #tpu.pipeline_mode<synchronous>, transform_indices = @transform_2, window_bounds = array<i64: 8, 1>}, {pipeline_mode = #tpu.pipeline_mode<synchronous>, transform_indices = @transform_3, window_bounds = array<i64: 32, 8>}, {pipeline_mode = #tpu.pipeline_mode<synchronous>, transform_indices = @transform_4, window_bounds = array<i64: 32, 1>}, {pipeline_mode = #tpu.pipeline_mode<synchronous>, transform_indices = @transform_5, window_bounds = array<i64: 10, 32>}, {transform_indices = @transform_6, window_bounds = array<i64: 1, 1, 128>}]} {
    %c0 = arith.constant 0 : index
    %c0_0 = arith.constant 0 : index
    %0 = vector.load %arg2[%c0, %c0_0] : memref<8x36xbf16, #tpu.memory_space<vmem>>, vector<8x36xbf16>
    %c0_1 = arith.constant 0 : index
    %c0_2 = arith.constant 0 : index
    %1 = vector.load %arg1[%c0_1, %c0_2] : memref<36x256xbf16, #tpu.memory_space<vmem>>, vector<36x256xbf16>
    %cst = arith.constant dense<0.000000e+00> : vector<8x256xf32>
    %2 = tpu.matmul %0, %1, %cst {dimension_numbers = #tpu.dot_dimension_numbers<[1], [0], [0], [1], [0, 0, 1, 1], [], []>} : vector<8x36xbf16>, vector<36x256xbf16>, vector<8x256xf32> -> vector<8x256xf32>
    %c0_3 = arith.constant 0 : index
    %c0_4 = arith.constant 0 : index
    %3 = vector.load %arg3[%c0_3, %c0_4] : memref<8x1xf32, #tpu.memory_space<vmem>>, vector<8x1xf32>
    %4 = vector.broadcast %3 : vector<8x1xf32> to vector<8x256xf32>
    %5 = arith.addf %2, %4 : vector<8x256xf32>
    %cst_5 = arith.constant 0.000000e+00 : f32
    %6 = vector.broadcast %cst_5 : f32 to vector<8x256xf32>
    %7 = arith.maximumf %5, %6 : vector<8x256xf32>
    %cst_6 = arith.constant dense<0.000000e+00> : vector<8xf32>
    %8 = vector.multi_reduction <add>, %7, %cst_6 [1] : vector<8x256xf32> to vector<8xf32>
    %9 = vector.shape_cast %8 : vector<8xf32> to vector<8x1xf32>
    %cst_7 = arith.constant 2.560000e+02 : f32
    %10 = vector.broadcast %cst_7 : f32 to vector<8x1xf32>
    %11 = arith.divf %9, %10 : vector<8x1xf32>
    %c0_8 = arith.constant 0 : index
    %c0_9 = arith.constant 0 : index
    %12 = vector.load %arg4[%c0_8, %c0_9] : memref<32x8xbf16, #tpu.memory_space<vmem>>, vector<32x8xbf16>
    %13 = arith.truncf %11 : vector<8x1xf32> to vector<8x1xbf16>
    %cst_10 = arith.constant dense<0.000000e+00> : vector<32x1xf32>
    %14 = tpu.matmul %12, %13, %cst_10 {dimension_numbers = #tpu.dot_dimension_numbers<[1], [0], [0], [1], [0, 0, 1, 1], [], []>} : vector<32x8xbf16>, vector<8x1xbf16>, vector<32x1xf32> -> vector<32x1xf32>
    %c0_11 = arith.constant 0 : index
    %c0_12 = arith.constant 0 : index
    %15 = vector.load %arg5[%c0_11, %c0_12] : memref<32x1xf32, #tpu.memory_space<vmem>>, vector<32x1xf32>
    %16 = arith.addf %14, %15 : vector<32x1xf32>
    %17 = arith.mulf %16, %16 : vector<32x1xf32>
    %cst_13 = arith.constant dense<0.000000e+00> : vector<1xf32>
    %18 = vector.multi_reduction <add>, %17, %cst_13 [0] : vector<32x1xf32> to vector<1xf32>
    %19 = vector.shape_cast %18 : vector<1xf32> to vector<1x1xf32>
    %cst_14 = arith.constant 9.99999996E-13 : f32
    %20 = vector.broadcast %cst_14 : f32 to vector<1x1xf32>
    %21 = arith.addf %19, %20 : vector<1x1xf32>
    %22 = math.rsqrt %21 : vector<1x1xf32>
    %23 = vector.broadcast %22 : vector<1x1xf32> to vector<32x1xf32>
    %24 = arith.mulf %16, %23 : vector<32x1xf32>
    %25 = arith.truncf %24 : vector<32x1xf32> to vector<32x1xbf16>
    %c0_15 = arith.constant 0 : index
    %c0_16 = arith.constant 0 : index
    %26 = vector.load %arg6[%c0_15, %c0_16] : memref<10x32xbf16, #tpu.memory_space<vmem>>, vector<10x32xbf16>
    %cst_17 = arith.constant dense<0.000000e+00> : vector<10x1xf32>
    %27 = tpu.matmul %26, %25, %cst_17 {dimension_numbers = #tpu.dot_dimension_numbers<[1], [0], [0], [1], [0, 0, 1, 1], [], []>} : vector<10x32xbf16>, vector<32x1xbf16>, vector<10x1xf32> -> vector<10x1xf32>
    %cst_18 = arith.constant dense<0xFF800000> : vector<1xf32>
    %28 = vector.multi_reduction <maximumf>, %27, %cst_18 [0] : vector<10x1xf32> to vector<1xf32>
    %29 = vector.shape_cast %28 : vector<1xf32> to vector<1x1xf32>
    %30 = tpu.iota {dimensions = array<i32: 0>} : vector<10x1xi32>
    %31 = vector.broadcast %29 : vector<1x1xf32> to vector<10x1xf32>
    %32 = arith.cmpf oge, %27, %31 : vector<10x1xf32>
    %c10_i32 = arith.constant 10 : i32
    %33 = vector.broadcast %c10_i32 : i32 to vector<10x1xi32>
    %34 = arith.select %32, %30, %33 : vector<10x1xi1>, vector<10x1xi32>
    %cst_19 = arith.constant dense<2147483647> : vector<1xi32>
    %35 = vector.multi_reduction <minsi>, %34, %cst_19 [0] : vector<10x1xi32> to vector<1xi32>
    %36 = vector.shape_cast %35 : vector<1xi32> to vector<1x1xi32>
    %37 = vector.shape_cast %36 : vector<1x1xi32> to vector<1x1x1xi32>
    %38 = vector.shape_cast %37 : vector<1x1x1xi32> to vector<1x1x1xi32>
    %39 = vector.broadcast %38 : vector<1x1x1xi32> to vector<1x1x128xi32>
    %c0_20 = arith.constant 0 : index
    %c0_21 = arith.constant 0 : index
    %c0_22 = arith.constant 0 : index
    %40 = vector.load %arg7[%c0_20, %c0_21, %c0_22] : memref<1x1x128xi32, #tpu.memory_space<vmem>>, vector<1x1x128xi32>
    tpu.vector_store %arg7[%c0_20, %c0_21, %c0_22], %39 {strides = array<i32>} : memref<1x1x128xi32, #tpu.memory_space<vmem>>, vector<1x1x128xi32>,
    return
  }
  func.func @transform_0(%arg0: i32) -> (i32, i32) {
    %c0_i32 = arith.constant 0 : i32
    %c0_i32_0 = arith.constant 0 : i32
    return %c0_i32, %arg0 : i32, i32
  }
  func.func @transform_1(%arg0: i32) -> (i32, i32) {
    %c0_i32 = arith.constant 0 : i32
    %c0_i32_0 = arith.constant 0 : i32
    %c0_i32_1 = arith.constant 0 : i32
    return %c0_i32, %c0_i32_0 : i32, i32
  }
  func.func @transform_2(%arg0: i32) -> (i32, i32) {
    %c0_i32 = arith.constant 0 : i32
    %c0_i32_0 = arith.constant 0 : i32
    %c0_i32_1 = arith.constant 0 : i32
    return %c0_i32, %c0_i32_0 : i32, i32
  }
  func.func @transform_3(%arg0: i32) -> (i32, i32) {
    %c0_i32 = arith.constant 0 : i32
    %c0_i32_0 = arith.constant 0 : i32
    %c0_i32_1 = arith.constant 0 : i32
    return %c0_i32, %c0_i32_0 : i32, i32
  }
  func.func @transform_4(%arg0: i32) -> (i32, i32) {
    %c0_i32 = arith.constant 0 : i32
    %c0_i32_0 = arith.constant 0 : i32
    %c0_i32_1 = arith.constant 0 : i32
    return %c0_i32, %c0_i32_0 : i32, i32
  }
  func.func @transform_5(%arg0: i32) -> (i32, i32) {
    %c0_i32 = arith.constant 0 : i32
    %c0_i32_0 = arith.constant 0 : i32
    %c0_i32_1 = arith.constant 0 : i32
    return %c0_i32, %c0_i32_0 : i32, i32
  }
  func.func @transform_6(%arg0: i32) -> (i32, i32, i32) {
    %c0_i32 = arith.constant 0 : i32
    %c0_i32_0 = arith.constant 0 : i32
    %c0_i32_1 = arith.constant 0 : i32
    return %arg0, %c0_i32, %c0_i32_0 : i32, i32, i32
  }
}

</mosaic_0001>

<llo_original>
// kernel: classification_eval_forward.1
$region0: #{classification_eval_forward.1}
  #allocation0 [shape = 'u32[]', space=smem, size = 0x4, offset = 0x4, fixed_abs, tag = 'smem constant byte address 0x4 - core index']
  #allocation1 [shape = 'u32[144,128]{1,0:T(1,128)}', space=vmem, size = 0x12000, scoped, tag = 'internal scratch']
  %s0 = inlined_call_operand.vmem [shape: bf16[36,512], index: 0, kind: input, shape index: {}]
  %s1 = inlined_call_operand.vmem [shape: bf16[8,36], index: 1, kind: input, shape index: {}]
  %s2 = inlined_call_operand.vmem [shape: f32[8,1], index: 2, kind: input, shape index: {}]
  %s3 = inlined_call_operand.vmem [shape: bf16[32,8], index: 3, kind: input, shape index: {}]
  %s4 = inlined_call_operand.vmem [shape: f32[32,1], index: 4, kind: input, shape index: {}]
  %s5 = inlined_call_operand.vmem [shape: bf16[10,32], index: 5, kind: input, shape index: {}]
  %s6 = inlined_call_operand.vmem [shape: s32[2,1,128], index: 6, kind: output, shape index: {}]
  %s7 = sld [smem:[#allocation0]]
  $region95: #{classification_eval_forward.1} parent=0
    _
  %s9 = ssub.s32 1, %s7
  %s10 = scalar_select 0, %s9, %s7
  $region1: #{classification_eval_forward.1} parent=0
    #allocation2 [shape = 'u8[40960]{0}', space=vmem, size = 0xa000, scoped, tag = 'input window, operand 0']
    loop: start=0, step=1, limit=4
    $region2: #{classification_eval_forward.1} parent=1 // loop_pre_header
      _
    $region3: #{classification_eval_forward.1} parent=1 // loop_header
      %s12 = sphi 0, %s16
      %p13 = scmp.ge.s32.totalorder %s12, 4
      %s22 = sphi 0, %s24
      %s25 = sphi 0, %s22
      %s26 = sphi 0, %s25
      %s42 = sphi 0, %s26
      %s46 = sphi 0, %s46
      %s48 = sphi 0, %s46
      %s49 = sphi 0, %s48
      %s63 = sphi 0, %s49
      %s67 = sphi 0, %s67
      %s69 = sphi 0, %s67
      %s70 = sphi 0, %s69
      %s84 = sphi 0, %s70
      %s88 = sphi 0, %s88
      %s90 = sphi 0, %s88
      %s91 = sphi 0, %s90
      %s105 = sphi 0, %s91
      %s109 = sphi 0, %s109
      %s111 = sphi 0, %s109
      %s112 = sphi 0, %s111
      %s126 = sphi 0, %s112
      %s130 = sphi 0, %s130
      %s132 = sphi 0, %s130
      %s133 = sphi 0, %s132
      %s147 = sphi 0, %s133
      %s153 = sphi 0, %s155
      %s156 = sphi 0, %s153
      %s157 = sphi 0, %s156
      %s173 = sphi 0, %s157
    $region4: #{classification_eval_forward.1} parent=1 // loop_header_branch
      %15 = sbr.rel (%p13) target = $region8
    $region5: #{classification_eval_forward.1} parent=1 // loop_body
      %s17 = ssub.s32 %s12, 1
      %s18 = ssub.s32 %s12, 2
      %s19 = sadd.s32 %s12, 1
      %s20 = ssub.s32 %s12, %s19
      %p21 = scmp.eq.s32.totalorder %s20, 0
      %s23 = sadd.s32 %s22, 1
      %s24 = scalar_select %p21, %s22, %s23
      %p27 = pneg %p21
      %p28 = scmp.eq.s32.totalorder %s12, 1
      %p29 = por %p27, %p28
      %p30 = scmp.ne.s32.totalorder %s22, %s25
      %p31 = scmp.eq.s32.totalorder %s12, 0
      %p32 = por %p30, %p31
      %p33 = scmp.ne.s32.totalorder %s22, %s25
      %p34 = scmp.eq.s32.totalorder %s17, 1
      %p35 = por %p33, %p34
      %p36 = scmp.ne.s32.totalorder %s25, %s26
      %p37 = scmp.eq.s32.totalorder %s17, 0
      %p38 = por %p36, %p37
      %p39 = scmp.ne.s32.totalorder %s25, %s26
      %p40 = scmp.eq.s32.totalorder %s18, 1
      %p41 = por %p39, %p40
      %p43 = scmp.ne.s32.totalorder %s26, %s42
      %p44 = scmp.eq.s32.totalorder %s18, 0
      %p45 = por %p43, %p44
      %s47 = sadd.s32 %s46, 1
      %p50 = scmp.eq.s32.totalorder %s12, 1
      %p51 = scmp.ne.s32.totalorder %s46, %s48
      %p52 = scmp.eq.s32.totalorder %s12, 0
      %p53 = por %p51, %p52
      %p54 = scmp.ne.s32.totalorder %s46, %s48
      %p55 = scmp.eq.s32.totalorder %s17, 1
      %p56 = por %p54, %p55
      %p57 = scmp.ne.s32.totalorder %s48, %s49
      %p58 = scmp.eq.s32.totalorder %s17, 0
      %p59 = por %p57, %p58
      %p60 = scmp.ne.s32.totalorder %s48, %s49
      %p61 = scmp.eq.s32.totalorder %s18, 1
      %p62 = por %p60, %p61
      %p64 = scmp.ne.s32.totalorder %s49, %s63
      %p65 = scmp.eq.s32.totalorder %s18, 0
      %p66 = por %p64, %p65
      %s68 = sadd.s32 %s67, 1
      %p71 = scmp.eq.s32.totalorder %s12, 1
      %p72 = scmp.ne.s32.totalorder %s67, %s69
      %p73 = scmp.eq.s32.totalorder %s12, 0
      %p74 = por %p72, %p73
      %p75 = scmp.ne.s32.totalorder %s67, %s69
      %p76 = scmp.eq.s32.totalorder %s17, 1
      %p77 = por %p75, %p76
      %p78 = scmp.ne.s32.totalorder %s69, %s70
      %p79 = scmp.eq.s32.totalorder %s17, 0
      %p80 = por %p78, %p79
      %p81 = scmp.ne.s32.totalorder %s69, %s70
      %p82 = scmp.eq.s32.totalorder %s18, 1
      %p83 = por %p81, %p82
      %p85 = scmp.ne.s32.totalorder %s70, %s84
      %p86 = scmp.eq.s32.totalorder %s18, 0
      %p87 = por %p85, %p86
      %s89 = sadd.s32 %s88, 1
      %p92 = scmp.eq.s32.totalorder %s12, 1
      %p93 = scmp.ne.s32.totalorder %s88, %s90
      %p94 = scmp.eq.s32.totalorder %s12, 0
      %p95 = por %p93, %p94
      %p96 = scmp.ne.s32.totalorder %s88, %s90
      %p97 = scmp.eq.s32.totalorder %s17, 1
      %p98 = por %p96, %p97
      %p99 = scmp.ne.s32.totalorder %s90, %s91
      %p100 = scmp.eq.s32.totalorder %s17, 0
      %p101 = por %p99, %p100
      %p102 = scmp.ne.s32.totalorder %s90, %s91
      %p103 = scmp.eq.s32.totalorder %s18, 1
      %p104 = por %p102, %p103
      %p106 = scmp.ne.s32.totalorder %s91, %s105
      %p107 = scmp.eq.s32.totalorder %s18, 0
      %p108 = por %p106, %p107
      %s110 = sadd.s32 %s109, 1
      %p113 = scmp.eq.s32.totalorder %s12, 1
      %p114 = scmp.ne.s32.totalorder %s109, %s111
      %p115 = scmp.eq.s32.totalorder %s12, 0
      %p116 = por %p114, %p115
      %p117 = scmp.ne.s32.totalorder %s109, %s111
      %p118 = scmp.eq.s32.totalorder %s17, 1
      %p119 = por %p117, %p118
      %p120 = scmp.ne.s32.totalorder %s111, %s112
      %p121 = scmp.eq.s32.totalorder %s17, 0
      %p122 = por %p120, %p121
      %p123 = scmp.ne.s32.totalorder %s111, %s112
      %p124 = scmp.eq.s32.totalorder %s18, 1
      %p125 = por %p123, %p124
      %p127 = scmp.ne.s32.totalorder %s112, %s126
      %p128 = scmp.eq.s32.totalorder %s18, 0
      %p129 = por %p127, %p128
      %s131 = sadd.s32 %s130, 1
      %p134 = scmp.eq.s32.totalorder %s12, 1
      %p135 = scmp.ne.s32.totalorder %s130, %s132
      %p136 = scmp.eq.s32.totalorder %s12, 0
      %p137 = por %p135, %p136
      %p138 = scmp.ne.s32.totalorder %s130, %s132
      %p139 = scmp.eq.s32.totalorder %s17, 1
      %p140 = por %p138, %p139
      %p141 = scmp.ne.s32.totalorder %s132, %s133
      %p142 = scmp.eq.s32.totalorder %s17, 0
      %p143 = por %p141, %p142
      %p144 = scmp.ne.s32.totalorder %s132, %s133
      %p145 = scmp.eq.s32.totalorder %s18, 1
      %p146 = por %p144, %p145
      %p148 = scmp.ne.s32.totalorder %s133, %s147
      %p149 = scmp.eq.s32.totalorder %s18, 0
      %p150 = por %p148, %p149
      %s151 = ssub.s32 %s12, %s19
      %p152 = scmp.eq.s32.totalorder %s151, 0
      %s154 = sadd.s32 %s153, 1
      %s155 = scalar_select %p152, %s153, %s154
      %p158 = pneg %p152
      %p159 = scmp.eq.s32.totalorder %s12, 1
      %p160 = por %p158, %p159
      %p161 = scmp.ne.s32.totalorder %s153, %s156
      %p162 = scmp.eq.s32.totalorder %s12, 0
      %p163 = por %p161, %p162
      %p164 = scmp.ne.s32.totalorder %s153, %s156
      %p165 = scmp.eq.s32.totalorder %s17, 1
      %p166 = por %p164, %p165
      %p167 = scmp.ne.s32.totalorder %s156, %s157
      %p168 = scmp.eq.s32.totalorder %s17, 0
      %p169 = por %p167, %p168
      %p170 = scmp.ne.s32.totalorder %s156, %s157
      %p171 = scmp.eq.s32.totalorder %s18, 1
      %p172 = por %p170, %p171
      %p174 = scmp.ne.s32.totalorder %s157, %s173
      %p175 = scmp.eq.s32.totalorder %s18, 0
      %p176 = por %p174, %p175
      %p177 = scmp.le.s32.totalorder 1, %s12
      %p178 = scmp.lt.s32.totalorder %s12, 3
      %p179 = pnand %p177, %p178
      %p180 = pneg %p179
      // Predicated region
      $region9: #{classification_eval_forward.1} parent=5 // pred_check
        _
      $region10: #{classification_eval_forward.1} parent=5 // pred_check_branch
        %182 = sbr.rel (%p179) target = $region12
      $region11: #{classification_eval_forward.1} parent=5 // pred_region
        %s183 = ssub.s32 %s12, 1
        // Predicated region
        $region13: #{classification_eval_forward.1} parent=11 // pred_check
          %p184 = pneg %p59
        $region14: #{classification_eval_forward.1} parent=11 // pred_check_branch
          %186 = sbr.rel (%p184) target = $region16
        $region15: #{classification_eval_forward.1} parent=11 // pred_region
          _
        $region16: #{classification_eval_forward.1} parent=11 // pred_fallthru
          _
        // Predicated region
        $region17: #{classification_eval_forward.1} parent=11 // pred_check
          %p187 = pneg %p80
        $region18: #{classification_eval_forward.1} parent=11 // pred_check_branch
          %189 = sbr.rel (%p187) target = $region20
        $region19: #{classification_eval_forward.1} parent=11 // pred_region
          _
        $region20: #{classification_eval_forward.1} parent=11 // pred_fallthru
          _
        // Predicated region
        $region21: #{classification_eval_forward.1} parent=11 // pred_check
          %p190 = pneg %p101
        $region22: #{classification_eval_forward.1} parent=11 // pred_check_branch
          %192 = sbr.rel (%p190) target = $region24
        $region23: #{classification_eval_forward.1} parent=11 // pred_region
          _
        $region24: #{classification_eval_forward.1} parent=11 // pred_fallthru
          _
        // Predicated region
        $region25: #{classification_eval_forward.1} parent=11 // pred_check
          %p193 = pneg %p122
        $region26: #{classification_eval_forward.1} parent=11 // pred_check_branch
          %195 = sbr.rel (%p193) target = $region28
        $region27: #{classification_eval_forward.1} parent=11 // pred_region
          _
        $region28: #{classification_eval_forward.1} parent=11 // pred_fallthru
          _
        // Predicated region
        $region29: #{classification_eval_forward.1} parent=11 // pred_check
          %p196 = pneg %p143
        $region30: #{classification_eval_forward.1} parent=11 // pred_check_branch
          %198 = sbr.rel (%p196) target = $region32
        $region31: #{classification_eval_forward.1} parent=11 // pred_region
          _
        $region32: #{classification_eval_forward.1} parent=11 // pred_fallthru
          _
      $region12: #{classification_eval_forward.1} parent=5 // pred_fallthru
        _
      %p199 = scmp.lt.s32.totalorder %s12, 2
      // Predicated region
      $region33: #{classification_eval_forward.1} parent=5 // pred_check
        %p200 = pneg %p199
      $region34: #{classification_eval_forward.1} parent=5 // pred_check_branch
        %202 = sbr.rel (%p200) target = $region36
      $region35: #{classification_eval_forward.1} parent=5 // pred_region
        // Predicated region
        $region37: #{classification_eval_forward.1} parent=35 // pred_check
          %p203 = pneg %p32
        $region38: #{classification_eval_forward.1} parent=35 // pred_check_branch
          %205 = sbr.rel (%p203) target = $region40
        $region39: #{classification_eval_forward.1} parent=35 // pred_region
          %s206 = sand.u32 %s22, 1
          %s207 = sand.u32 %s22, 1
          %s208 = smul.addr %s207, 40
          %s209 = scalar_lea.vmem [#allocation2], %s208
          %s210 = smul.u32 2, %s12
          %s211 = smul.addr %s210, 4
          %s212 = scalar_lea.vmem %s0, %s211
          // Predicated region
          $region41: #{classification_eval_forward.1} parent=39 // pred_check
            _
          $region42: #{classification_eval_forward.1} parent=39 // pred_check_branch
            %214 = sbr.rel (0) target = $region44
          $region43: #{classification_eval_forward.1} parent=39 // pred_region
            // Predicated region
            $region45: #{classification_eval_forward.1} parent=43 // pred_check
              _
            $region46: #{classification_eval_forward.1} parent=43 // pred_check_branch
              %216 = sbr.rel (0) target = $region48
            $region47: #{classification_eval_forward.1} parent=43 // pred_region
              // Predicated region
              $region60: #{classification_eval_forward.1} parent=47 // pred_check
                _
              $region61: #{classification_eval_forward.1} parent=47 // pred_check_branch
                %239 = sbr.rel (0) target = $region63
              $region62: #{classification_eval_forward.1} parent=47 // pred_region
                loop: start=0, step=1, limit=1
                $region64: #{classification_eval_forward.1} parent=62 // loop_pre_header
                  _
                $region65: #{classification_eval_forward.1} parent=62 // loop_header
                  %s241 = sphi 0, %s245
                  %p242 = scmp.ge.s32.totalorder %s241, 1
                  %s246 = sphi %s212, %s212
                  %s247 = sphi %s209, %s209
                $region66: #{classification_eval_forward.1} parent=62 // loop_header_branch
                  %244 = sbr.rel (%p242) target = $region70
                $region67: #{classification_eval_forward.1} parent=62 // loop_body
                  %v248 = vld [vmem:[%s246] sm:$0xff]
                  %249 = vst [vmem:[%s247] sm:$0xff] %v248
                  %v250 = vld [vmem:[%s246 + $0x10] sm:$0xff]
                  %251 = vst [vmem:[%s247 + $0x8] sm:$0xff] %v250
                  %v252 = vld [vmem:[%s246 + $0x20] sm:$0xff]
                  %253 = vst [vmem:[%s247 + $0x10] sm:$0xff] %v252
                  %v254 = vld [vmem:[%s246 + $0x30] sm:$0xff]
                  %255 = vst [vmem:[%s247 + $0x18] sm:$0xff] %v254
                  %v256 = vld [vmem:[%s246 + $0x40] sm:$0xff]
                  %257 = vst [vmem:[%s247 + $0x20] sm:$0xff] %v256
                $region68: #{classification_eval_forward.1} parent=62 // loop_footer
                  %s245 = sadd.s32 1, %s241
                $region69: #{classification_eval_forward.1} parent=62 // loop_footer_branch
                  %240 = sbr.rel target = $region65
                $region70: #{classification_eval_forward.1} parent=62 // loop_exit
                  _
              $region63: #{classification_eval_forward.1} parent=47 // pred_fallthru
                _
              // Predicated region
              $region71: #{classification_eval_forward.1} parent=47 // pred_check
                _
              $region72: #{classification_eval_forward.1} parent=47 // pred_check_branch
                %259 = sbr.rel target = $region74
              $region73: #{classification_eval_forward.1} parent=47 // pred_region
                _
              $region74: #{classification_eval_forward.1} parent=47 // pred_fallthru
                _
            $region48: #{classification_eval_forward.1} parent=43 // pred_fallthru
              _
            // Predicated region
            $region49: #{classification_eval_forward.1} parent=43 // pred_check
              _
            $region50: #{classification_eval_forward.1} parent=43 // pred_check_branch
              %218 = sbr.rel target = $region52
            $region51: #{classification_eval_forward.1} parent=43 // pred_region
              loop: start=0, step=1, limit=1
              $region53: #{classification_eval_forward.1} parent=51 // loop_pre_header
                _
              $region54: #{classification_eval_forward.1} parent=51 // loop_header
                %s221 = sphi 0, %s225
                %p222 = scmp.ge.s32.totalorder %s221, 1
                %s226 = sphi %s212, %s212
                %s227 = sphi %s209, %s209
              $region55: #{classification_eval_forward.1} parent=51 // loop_header_branch
                %224 = sbr.rel (%p222) target = $region59
              $region56: #{classification_eval_forward.1} parent=51 // loop_body
                %v228 = vld [vmem:[%s226] sm:$0xff]
                %229 = vst [vmem:[%s227] sm:$0xff] %v228
                %v230 = vld [vmem:[%s226 + $0x10] sm:$0xff]
                %231 = vst [vmem:[%s227 + $0x8] sm:$0xff] %v230
                %v232 = vld [vmem:[%s226 + $0x20] sm:$0xff]
                %233 = vst [vmem:[%s227 + $0x10] sm:$0xff] %v232
                %v234 = vld [vmem:[%s226 + $0x30] sm:$0xff]
                %235 = vst [vmem:[%s227 + $0x18] sm:$0xff] %v234
                %v236 = vld [vmem:[%s226 + $0x40] sm:$0xff]
                %237 = vst [vmem:[%s227 + $0x20] sm:$0xff] %v236
              $region57: #{classification_eval_forward.1} parent=51 // loop_footer
                %s225 = sadd.s32 1, %s221
              $region58: #{classification_eval_forward.1} parent=51 // loop_footer_branch
                %220 = sbr.rel target = $region54
              $region59: #{classification_eval_forward.1} parent=51 // loop_exit
                _
            $region52: #{classification_eval_forward.1} parent=43 // pred_fallthru
              _
          $region44: #{classification_eval_forward.1} parent=39 // pred_fallthru
            _
          %260 = vnop
        $region40: #{classification_eval_forward.1} parent=35 // pred_fallthru
          _
      $region36: #{classification_eval_forward.1} parent=5 // pred_fallthru
        _
      %p261 = scmp.le.s32.totalorder 1, %s12
      %p262 = scmp.lt.s32.totalorder %s12, 3
      %p263 = pnand %p261, %p262
      %p264 = pneg %p263
      // Predicated region
      $region75: #{classification_eval_forward.1} parent=5 // pred_check
        _
      $region76: #{classification_eval_forward.1} parent=5 // pred_check_branch
        %266 = sbr.rel (%p263) target = $region78
      $region77: #{classification_eval_forward.1} parent=5 // pred_region
        %s267 = ssub.s32 %s12, 1
        %s268 = sand.u32 %s25, 1
        %s269 = sand.u32 %s25, 1
        %s270 = smul.addr %s269, 40
        %s271 = scalar_lea.vmem [#allocation2], %s270
        // Predicated region
        $region79: #{classification_eval_forward.1} parent=77 // pred_check
          %p272 = pneg %p38
        $region80: #{classification_eval_forward.1} parent=77 // pred_check_branch
          %274 = sbr.rel (%p272) target = $region82
        $region81: #{classification_eval_forward.1} parent=77 // pred_region
          _
        $region82: #{classification_eval_forward.1} parent=77 // pred_fallthru
          _
        %s275 = sand.u32 %s25, 1
        %s276 = sand.u32 %s25, 1
        %s277 = smul.addr %s276, 40
        %s278 = scalar_lea.vmem [#allocation2], %s277
        %p279 = pneg %p38
        %p280 = pneg %p35
        %p281 = pneg %p59
        %p282 = pneg %p56
        %p283 = pneg %p80
        %p284 = pneg %p77
        %p285 = pneg %p101
        %p286 = pneg %p98
        %p287 = pneg %p122
        %p288 = pneg %p119
        %p289 = pneg %p143
        %p290 = pneg %p140
        %p291 = pneg %p169
        %p292 = pneg %p166
        %p293 = scmp.lt.s32.totalorder %s17, 1
        %s294 = scalar_select %p293, %s17, 1
        %s295 = scalar_lea.vmem %s6, %s294
        %s296 = smul.u32 2, %s17
        %p297 = scmp.lt.s32.totalorder %s17, 1
        %s298 = scalar_select %p297, %s17, 1
        %s299 = scalar_lea.vmem %s6, %s298
        %v301 = vld [vmem:[%s1] sm:$0xf]
        %v302 = vld [vmem:[%s271] sm:$0xff]
        %v303 = vld [vmem:[%s271 + $0x8] sm:$0xff]
        %v304 = vld [vmem:[%s271 + $0x10] sm:$0xff]
        %v305 = vld [vmem:[%s271 + $0x18] sm:$0xff]
        %v306 = vld [vmem:[%s271 + $0x20] sm:$0x33]
        %v307 = vld [vmem:[%s2] sm:$0xff]
        %309 = vset.pattern.permute.xlu0 0
        %310 = vperm.xlu0 %309, %v307
        %v311 = vpop.permute.xlu0 %310
        %v318 = vunpack.c.l.b16 %v302
        %v319 = vunpack.c.h.b16 %v302
        %v320 = vunpack.c.l.b16 %v303
        %v321 = vunpack.c.h.b16 %v303
        %v322 = vunpack.c.l.b16 %v304
        %v323 = vunpack.c.h.b16 %v304
        %v324 = vunpack.c.l.b16 %v305
        %v325 = vunpack.c.h.b16 %v305
        %v326 = vunpack.c.l.b16 %v306
        %v327 = vunpack.c.h.b16 %v306
        %v328 = vpack.c.b16 %v320, %v318
        %v329 = vpack.c.b16 %v321, %v319
        %v330 = vpack.c.b16 %v324, %v322
        %v331 = vpack.c.b16 %v325, %v323
        %v332 = vpack.c.b16 %v326, %v326
        %v333 = vpack.c.b16 %v327, %v327
        %vm338 = vcmask 293888
        %v340 = vsel %vm338, %v301, 0
        %vm342 = vcmask 1041408
        %v344 = vsel %vm342, %v332, 0
        %v347 = vsel %vm342, %v333, 0
        %349 = vmatprep.subr.bf16.mxu0 %v329
        %350 = vmatpush1.bf16.msra.mxu0 %v328
        %351 = vmatprep.subr.bf16.mxu0 %v331
        %352 = vmatpush1.bf16.msra.mxu0 %v330
        %353 = vmatprep.subr.bf16.mxu0 %v347
        %354 = vmatpush1.bf16.msra.mxu0 %v344
        %355 = vmatprep.subr.bf16.mxu0 0
        %356 = vmatpush1.bf16.msra.mxu0 0
        %357 = vmatprep.subr.bf16.mxu0 0
        %358 = vmatpush1.bf16.msra.mxu0 0
        %359 = vmatprep.subr.bf16.mxu0 0
        %360 = vmatpush1.bf16.msra.mxu0 0
        %361 = vmatprep.subr.bf16.mxu0 0
        %362 = vmatpush1.bf16.msra.mxu0 0
        %363 = vmatprep.subr.bf16.mxu0 0
        %364 = vmatpush1.bf16.msra.mxu0 0
        %365 = vmatprep.subr.bf16.mxu0 0
        %366 = vmatpush1.bf16.msra.mxu0 0
        %367 = vmatprep.subr.bf16.mxu0 0
        %368 = vmatpush1.bf16.msra.mxu0 0
        %369 = vmatprep.subr.bf16.mxu0 0
        %370 = vmatpush1.bf16.msra.mxu0 0
        %371 = vmatprep.subr.bf16.mxu0 0
        %372 = vmatpush1.bf16.msra.mxu0 0
        %373 = vmatprep.subr.bf16.mxu0 0
        %374 = vmatpush1.bf16.msra.mxu0 0
        %375 = vmatprep.subr.bf16.mxu0 0
        %376 = vmatpush1.bf16.msra.mxu0 0
        %377 = vmatprep.subr.bf16.mxu0 0
        %378 = vmatpush1.bf16.msra.mxu0 0
        %379 = vmatprep.subr.bf16.mxu0 0
        %380 = vmatpush1.bf16.msra.mxu0 0
        %381 = vmatprep.mubr.bf16.mxu0 0
        %382 = vmatmul.mubr.bf16.gmra.mrb[0].mxu0 %v340
        %v383 = vpop.f32.mrb[0].mxu0
        %v384 = vadd.f32 %v311, %v383
        %v385 = vpop.f32.mrb[0].mxu0
        %v386 = vadd.f32 %v311, %v385
        %v387 = vpop.f32.mrb[0].mxu0
        %v388 = vpop.f32.mrb[0].mxu0
        %389 = vdwg.mxu0
        %v390 = vmax.f32 %v384, 0.0
        %v391 = vmax.f32 %v386, 0.0
        %v392 = vadd.f32 %v390, %v391
        %393 = vadd.xlane.f32.xlu0 %v392
        %v394 = vpop.xlane.xlu0 %393
        %v395 = vrcp.pop 256.0
        %v396 = vmul.f32 %v394, %v395
        %v397 = vld [vmem:[%s3] sm:$0xf]
        %v398 = vld [vmem:[%s3 + $0x4] sm:$0xf]
        %v399 = vld [vmem:[%s3 + $0x8] sm:$0xf]
        %v400 = vld [vmem:[%s3 + $0xc] sm:$0xf]
        %v401 = vpack.c.bf16 %v396, %v396
        %v402 = vld [vmem:[%s4] sm:$0xff]
        %v403 = vld [vmem:[%s4 + $0x8] sm:$0xff]
        %v404 = vld [vmem:[%s4 + $0x10] sm:$0xff]
        %v405 = vld [vmem:[%s4 + $0x18] sm:$0xff]
        %v410 = vunpack.c.l.b16 %v397
        %v411 = vunpack.c.l.b16 %v398
        %v412 = vunpack.c.l.b16 %v399
        %v413 = vunpack.c.l.b16 %v400
        %v414 = vpack.c.b16 %v411, %v410
        %v415 = vpack.c.b16 %v413, %v412
        %vm416 = vcmask 64512
        %v418 = vsel %vm416, %v414, 0
        %v421 = vsel %vm416, %v415, 0
        %vm423 = vcmask 1043456
        %v425 = vsel %vm423, %v401, 0
        %427 = vmatprep.subr.bf16.mxu0 0
        %428 = vmatpush1.bf16.msra.mxu0 %v425
        %429 = vmatprep.subr.bf16.mxu0 0
        %430 = vmatpush1.bf16.msra.mxu0 0
        %431 = vmatprep.subr.bf16.mxu0 0
        %432 = vmatpush1.bf16.msra.mxu0 0
        %433 = vmatprep.subr.bf16.mxu0 0
        %434 = vmatpush1.bf16.msra.mxu0 0
        %435 = vmatprep.subr.bf16.mxu0 0
        %436 = vmatpush1.bf16.msra.mxu0 0
        %437 = vmatprep.subr.bf16.mxu0 0
        %438 = vmatpush1.bf16.msra.mxu0 0
        %439 = vmatprep.subr.bf16.mxu0 0
        %440 = vmatpush1.bf16.msra.mxu0 0
        %441 = vmatprep.subr.bf16.mxu0 0
        %442 = vmatpush1.bf16.msra.mxu0 0
        %443 = vmatprep.subr.bf16.mxu0 0
        %444 = vmatpush1.bf16.msra.mxu0 0
        %445 = vmatprep.subr.bf16.mxu0 0
        %446 = vmatpush1.bf16.msra.mxu0 0
        %447 = vmatprep.subr.bf16.mxu0 0
        %448 = vmatpush1.bf16.msra.mxu0 0
        %449 = vmatprep.subr.bf16.mxu0 0
        %450 = vmatpush1.bf16.msra.mxu0 0
        %451 = vmatprep.subr.bf16.mxu0 0
        %452 = vmatpush1.bf16.msra.mxu0 0
        %453 = vmatprep.subr.bf16.mxu0 0
        %454 = vmatpush1.bf16.msra.mxu0 0
        %455 = vmatprep.subr.bf16.mxu0 0
        %456 = vmatpush1.bf16.msra.mxu0 0
        %457 = vmatprep.subr.bf16.mxu0 0
        %458 = vmatpush1.bf16.msra.mxu0 0
        %459 = vmatprep.mubr.bf16.mxu0 0
        %460 = vmatmul.mubr.bf16.gmra.mrb[0].mxu0 %v418
        %v461 = vpop.f32.mrb[0].mxu0
        %v462 = vadd.f32 %v402, %v461
        %v463 = vpop.f32.mrb[0].mxu0
        %v464 = vpop.f32.mrb[0].mxu0
        %v465 = vadd.f32 %v403, %v464
        %v466 = vpop.f32.mrb[0].mxu0
        %467 = vmatprep.mubr.bf16.mxu0 0
        %468 = vmatmul.mubr.bf16.gmra.mrb[0].mxu0 %v421
        %v469 = vpop.f32.mrb[0].mxu0
        %v470 = vadd.f32 %v404, %v469
        %v471 = vpop.f32.mrb[0].mxu0
        %v472 = vpop.f32.mrb[0].mxu0
        %v473 = vadd.f32 %v405, %v472
        %v474 = vpop.f32.mrb[0].mxu0
        %475 = vdwg.mxu0
        %v476 = vmul.f32 %v462, %v462
        %v477 = vmul.f32 %v465, %v465
        %v478 = vmul.f32 %v470, %v470
        %v479 = vmul.f32 %v473, %v473
        %vm480 = vcmask 7168
        %v481 = vsel %vm480, %v476, 0.0
        %v482 = vsel %vm480, %v477, 0.0
        %v483 = vadd.f32 %v481, %v482
        %v484 = vsel %vm480, %v478, 0.0
        %v485 = vadd.f32 %v483, %v484
        %v486 = vsel %vm480, %v479, 0.0
        %v487 = vadd.f32 %v485, %v486
        %v488 = vrot.slane %v487, 4
        %v489 = vadd.f32 %v487, %v488
        %v490 = vrot.slane %v489, 2
        %v491 = vadd.f32 %v489, %v490
        %v492 = vrot.slane %v491, 1
        %v493 = vadd.f32 %v491, %v492
        %v494 = vadd.f32 %v493, 1e-12
        %v495 = vrsqrt.pop %v494
        %v496 = vmul.f32 %v462, %v495
        %v497 = vmul.f32 %v465, %v495
        %v498 = vmul.f32 %v470, %v495
        %v499 = vmul.f32 %v473, %v495
        %v500 = vpack.c.bf16 %v497, %v496
        %v501 = vpack.c.bf16 %v499, %v498
        %v502 = vld [vmem:[%s5] sm:$0xf]
        %v503 = vld [vmem:[%s5 + $0x4] sm:$0x1]
        %v506 = vunpack.c.l.b16 %v502
        %v507 = vunpack.c.l.b16 %v503
        %v508 = vpack.c.b16 %v507, %v506
        %vm509 = vcmask 261120
        %v511 = vsel %vm509, %v508, 0
        %513 = vmatprep.subr.bf16.mxu0 0
        %514 = vmatpush1.bf16.msra.mxu0 %v500
        %515 = vmatprep.subr.bf16.mxu0 0
        %516 = vmatpush1.bf16.msra.mxu0 %v501
        %517 = vmatprep.subr.bf16.mxu0 0
        %518 = vmatpush1.bf16.msra.mxu0 0
        %519 = vmatprep.subr.bf16.mxu0 0
        %520 = vmatpush1.bf16.msra.mxu0 0
        %521 = vmatprep.subr.bf16.mxu0 0
        %522 = vmatpush1.bf16.msra.mxu0 0
        %523 = vmatprep.subr.bf16.mxu0 0
        %524 = vmatpush1.bf16.msra.mxu0 0
        %525 = vmatprep.subr.bf16.mxu0 0
        %526 = vmatpush1.bf16.msra.mxu0 0
        %527 = vmatprep.subr.bf16.mxu0 0
        %528 = vmatpush1.bf16.msra.mxu0 0
        %529 = vmatprep.subr.bf16.mxu0 0
        %530 = vmatpush1.bf16.msra.mxu0 0
        %531 = vmatprep.subr.bf16.mxu0 0
        %532 = vmatpush1.bf16.msra.mxu0 0
        %533 = vmatprep.subr.bf16.mxu0 0
        %534 = vmatpush1.bf16.msra.mxu0 0
        %535 = vmatprep.subr.bf16.mxu0 0
        %536 = vmatpush1.bf16.msra.mxu0 0
        %537 = vmatprep.subr.bf16.mxu0 0
        %538 = vmatpush1.bf16.msra.mxu0 0
        %539 = vmatprep.subr.bf16.mxu0 0
        %540 = vmatpush1.bf16.msra.mxu0 0
        %541 = vmatprep.subr.bf16.mxu0 0
        %542 = vmatpush1.bf16.msra.mxu0 0
        %543 = vmatprep.subr.bf16.mxu0 0
        %544 = vmatpush1.bf16.msra.mxu0 0
        %545 = vmatprep.mubr.bf16.mxu0 0
        %546 = vmatmul.mubr.bf16.gmra.mrb[0].mxu0 %v511
        %v547 = vpop.f32.mrb[0].mxu0
        %v548 = vadd.f32 0.0, %v547
        %v549 = vpop.f32.mrb[0].mxu0
        %v550 = vpop.f32.mrb[0].mxu0
        %v551 = vadd.f32 0.0, %v550
        %v552 = vpop.f32.mrb[0].mxu0
        %553 = vdwg.mxu0
        %v554 = vsel %vm480, %v548, -inf
        %vm555 = vcmask 1024
        %v556 = vsel %vm555, %v551, -inf
        %v557 = vmax.f32 %v554, %v556
        %v558 = vrot.slane %v557, 4
        %v559 = vmax.f32 %v557, %v558
        %v560 = vrot.slane %v559, 2
        %v561 = vmax.f32 %v559, %v560
        %v562 = vrot.slane %v561, 1
        %v563 = vmax.f32 %v561, %v562
        %v564 = vlaneseq
        %v565 = vshrl.u32 %v564, 7
        %v566 = vadd.s32 %v565, 8
        %vm567 = vcmp.ge.f32.partialorder %v548, %v563
        %vm568 = vcmp.ge.f32.partialorder %v551, %v563
        %v569 = vsel %vm567, %v565, 10
        %v570 = vsel %vm568, %v566, 10
        %v571 = vsel %vm480, %v569, 2147483647
        %v572 = vsel %vm555, %v570, 2147483647
        %vm573 = vcmp.lt.s32.totalorder %v571, %v572
        %v574 = vsel %vm573, %v571, %v572
        %v575 = vrot.slane %v574, 4
        %vm576 = vcmp.lt.s32.totalorder %v574, %v575
        %v577 = vsel %vm576, %v574, %v575
        %v578 = vrot.slane %v577, 2
        %vm579 = vcmp.lt.s32.totalorder %v577, %v578
        %v580 = vsel %vm579, %v577, %v578
        %v581 = vrot.slane %v580, 1
        %vm582 = vcmp.lt.s32.totalorder %v580, %v581
        %v583 = vsel %vm582, %v580, %v581
        %584 = vset.pattern.permute.xlu0 0
        %585 = vperm.xlu0 %584, %v583
        %v586 = vpop.permute.xlu0 %585
        %587 = vst [vmem:[%s299] sm:$0x1] %v586
        %p588 = scmp.lt.s32.totalorder %s17, 1
        %s589 = scalar_select %p588, %s17, 1
        %s590 = scalar_lea.vmem %s6, %s589
        // Predicated region
        $region83: #{classification_eval_forward.1} parent=77 // pred_check
          %p591 = pneg %p166
        $region84: #{classification_eval_forward.1} parent=77 // pred_check_branch
          %593 = sbr.rel (%p591) target = $region86
        $region85: #{classification_eval_forward.1} parent=77 // pred_region
          _
        $region86: #{classification_eval_forward.1} parent=77 // pred_fallthru
          _
      $region78: #{classification_eval_forward.1} parent=5 // pred_fallthru
        _
      %p594 = scmp.le.s32.totalorder 2, %s12
      // Predicated region
      $region87: #{classification_eval_forward.1} parent=5 // pred_check
        %p595 = pneg %p594
      $region88: #{classification_eval_forward.1} parent=5 // pred_check_branch
        %597 = sbr.rel (%p595) target = $region90
      $region89: #{classification_eval_forward.1} parent=5 // pred_region
        %s598 = ssub.s32 %s12, 2
        // Predicated region
        $region91: #{classification_eval_forward.1} parent=89 // pred_check
          %p599 = pneg %p172
        $region92: #{classification_eval_forward.1} parent=89 // pred_check_branch
          %601 = sbr.rel (%p599) target = $region94
        $region93: #{classification_eval_forward.1} parent=89 // pred_region
          %p602 = scmp.lt.s32.totalorder %s18, 1
          %s603 = scalar_select %p602, %s18, 1
          %s604 = scalar_lea.vmem %s6, %s603
        $region94: #{classification_eval_forward.1} parent=89 // pred_fallthru
          _
      $region90: #{classification_eval_forward.1} parent=5 // pred_fallthru
        _
    $region6: #{classification_eval_forward.1} parent=1 // loop_footer
      %s16 = sadd.s32 1, %s12
    $region7: #{classification_eval_forward.1} parent=1 // loop_footer_branch
      %11 = sbr.rel target = $region3
    $region8: #{classification_eval_forward.1} parent=1 // loop_exit
      _

</llo_original>
